<compile_context>
chip_gen: v6e
topology: v6e:2x2x1
jax: 0.10.0
libtpu: 0.0.40
codegen_flags: <defaults>
</compile_context>

<pallas_src>
import jax
import jax.numpy as jnp
from jax.experimental import pallas as pl
from jax.experimental.pallas import tpu as pltpu


def _make_resblock_kernel(L, cin, fuse_taps):
    def kernel(x_ref, w_ref, o_ref):
        # x_ref: (1, Cin, L), w_ref: (Cout, 3*Cin), o_ref: (1, Cout, L)
        x = x_ref[0].astype(jnp.float32)                            # (Cin, L)
        lane = jax.lax.broadcasted_iota(jnp.int32, x.shape, 1)      # lane index along L

        # Shifted copies for the k=0 / k=2 taps; conv padding=1 => zero the wrapped column.
        x_prev = jnp.where(lane == 0, 0.0,
                           pltpu.roll(x, shift=1, axis=1))          # x[:, l-1]
        x_next = jnp.where(lane == L - 1, 0.0,
                           pltpu.roll(x, shift=L - 1, axis=1))      # x[:, l+1]

        w = w_ref[...]                                              # (Cout, 3*Cin)
        if fuse_taps:
            # One MXU push with contraction depth 3*Cin instead of 3 depth-Cin matmuls.
            x_stack = jnp.concatenate([x_prev, x, x_next], axis=0)  # (3*Cin, L)
            acc = jnp.dot(w, x_stack, preferred_element_type=jnp.float32)
        else:
            acc = jnp.dot(w[:, :cin], x_prev, preferred_element_type=jnp.float32)
            acc += jnp.dot(w[:, cin:2 * cin], x, preferred_element_type=jnp.float32)
            acc += jnp.dot(w[:, 2 * cin:], x_next, preferred_element_type=jnp.float32)

        # ReLU then residual add (requires Cin == Cout, as in the PyTorch module's use).
        o_ref[0] = (jnp.maximum(acc, 0.0) + x).astype(o_ref.dtype)

    return kernel


def resblock_pallas(x_ncl, weight):
    """x_ncl: (N, Cin, L) float32 (PyTorch NCL).  weight: (Cout, Cin, 3) as in nn.Conv1d."""
    N, Cin, L = x_ncl.shape
    Cout = weight.shape[0]
    assert Cin == Cout, "residual add requires in_channels == out_channels"

    # Tiny glue (weights only): fold the 3 taps into the contraction dim -> (Cout, 3*Cin),
    # column order [tap0 | tap1 | tap2] to match the in-kernel [x_prev | x | x_next] stack.
    w_fused = jnp.transpose(weight, (0, 2, 1)).reshape(Cout, 3 * Cin)

    # Fused-tap concat needs sublane-aligned operands; fall back to 3 matmuls otherwise.
    fuse_taps = (Cin % 8) == 0

    # Scoped-VMEM budget: double-buffered x/out tiles + weights + intermediates.
    block_bytes = 4 * (Cin * L + Cout * L + 3 * Cin * Cout)
    vmem_limit = int(min(48 * 1024 * 1024, max(32 * 1024 * 1024, 8 * block_bytes)))

    # TODO(synk): for very long sequences on v7x (64 MiB VMEM) add an L-tile grid axis with a
    # 2-column halo (manual DMA double-buffer); unnecessary at these working-set sizes.
    return pl.pallas_call(
        _make_resblock_kernel(L, Cin, fuse_taps),
        out_shape=jax.ShapeDtypeStruct((N, Cout, L), x_ncl.dtype),
        grid_spec=pltpu.PrefetchScalarGridSpec(
            num_scalar_prefetch=0,
            grid=(N,),
            in_specs=[
                pl.BlockSpec((1, Cin, L), lambda b: (b, 0, 0)),       # activations (NCL)
                pl.BlockSpec((Cout, 3 * Cin), lambda b: (0, 0)),      # fused weights
            ],
            out_specs=pl.BlockSpec((1, Cout, L), lambda b: (b, 0, 0)),
        ),
        compiler_params=pltpu.CompilerParams(
            dimension_semantics=("parallel",),
            vmem_limit_bytes=vmem_limit,
        ),
    )(x_ncl, w_fused)


def resblock_reference(x_ncl, weight):
    """Pure-JAX reference matching PyTorch Conv1d(3,1,padding=1,bias=False) + relu + x."""
    out = jax.lax.conv_general_dilated(
        x_ncl, weight,
        window_strides=(1,),
        padding=[(1, 1)],
        dimension_numbers=("NCH", "OIH", "NCH"),
    )
    return jnp.maximum(out, 0.0) + x_ncl


if __name__ == "__main__":
    key = jax.random.PRNGKey(0)
    kx, kw = jax.random.split(key)

    N, C, L = 2, 8, 128          # batch, channels (in == out), sequence length
    x = jax.random.normal(kx, (N, C, L), dtype=jnp.float32)

    # Deterministic weight init, shape (out_channels, in_channels, kernel_size=3),
    # scaled like PyTorch's default kaiming-uniform bound 1/sqrt(fan_in).
    fan_in = C * 3
    bound = 1.0 / jnp.sqrt(jnp.float32(fan_in))
    w = jax.random.uniform(kw, (C, C, 3), dtype=jnp.float32,
                           minval=-bound, maxval=bound)

    out = jax.block_until_ready(resblock_pallas(x, w))
    ref = jax.block_until_ready(resblock_reference(x, w))

    assert out.shape == (N, C, L)
    assert jnp.allclose(out, ref, atol=1e-5, rtol=1e-5), "mismatch vs reference"
    print("KERNEL_OK")
</pallas_src>

<mosaic_0001>
module attributes {stable_mosaic.version = 11 : i64} {
  func.func @kernel(%arg0: i32, %arg1: memref<1x8x128xf32, #tpu.memory_space<vmem>>, %arg2: memref<8x24xf32, #tpu.memory_space<vmem>>, %arg3: memref<1x8x128xf32, #tpu.memory_space<vmem>>) attributes {dimension_semantics = [#tpu.dimension_semantics<parallel>], iteration_bounds = array<i64: 2>, scalar_prefetch = 0 : i64, scratch_operands = 0 : i64, tpu.core_type = #tpu.core_type<tc>, window_params = [{transform_indices = @transform_0, window_bounds = array<i64: 1, 8, 128>}, {pipeline_mode = #tpu.pipeline_mode<synchronous>, transform_indices = @transform_1, window_bounds = array<i64: 8, 24>}, {transform_indices = @transform_2, window_bounds = array<i64: 1, 8, 128>}]} {
    %c0 = arith.constant 0 : index
    %c0_0 = arith.constant 0 : index
    %c0_1 = arith.constant 0 : index
    %0 = vector.load %arg1[%c0, %c0_0, %c0_1] : memref<1x8x128xf32, #tpu.memory_space<vmem>>, vector<1x8x128xf32>
    %1 = vector.shape_cast %0 : vector<1x8x128xf32> to vector<8x128xf32>
    %2 = tpu.iota {dimensions = array<i32: 1>} : vector<8x128xi32>
    %c0_i32 = arith.constant 0 : i32
    %3 = vector.broadcast %c0_i32 : i32 to vector<8x128xi32>
    %4 = arith.cmpi eq, %2, %3 : vector<8x128xi32>
    %c1_i32 = arith.constant 1 : i32
    %5 = tpu.dynamic_rotate %1 by %c1_i32 dim 1 : vector<8x128xf32>, i32 -> vector<8x128xf32>
    %cst = arith.constant 0.000000e+00 : f32
    %6 = vector.broadcast %cst : f32 to vector<8x128xf32>
    %7 = arith.select %4, %6, %5 : vector<8x128xi1>, vector<8x128xf32>
    %c127_i32 = arith.constant 127 : i32
    %8 = vector.broadcast %c127_i32 : i32 to vector<8x128xi32>
    %9 = arith.cmpi eq, %2, %8 : vector<8x128xi32>
    %c127_i32_2 = arith.constant 127 : i32
    %10 = tpu.dynamic_rotate %1 by %c127_i32_2 dim 1 : vector<8x128xf32>, i32 -> vector<8x128xf32>
    %cst_3 = arith.constant 0.000000e+00 : f32
    %11 = vector.broadcast %cst_3 : f32 to vector<8x128xf32>
    %12 = arith.select %9, %11, %10 : vector<8x128xi1>, vector<8x128xf32>
    %c0_4 = arith.constant 0 : index
    %c0_5 = arith.constant 0 : index
    %13 = vector.load %arg2[%c0_4, %c0_5] : memref<8x24xf32, #tpu.memory_space<vmem>>, vector<8x24xf32>
    %14 = tpu.concatenate %7, %1, %12 in 0 : vector<8x128xf32>, vector<8x128xf32>, vector<8x128xf32> -> vector<24x128xf32>
    %cst_6 = arith.constant dense<0.000000e+00> : vector<8x128xf32>
    %15 = tpu.matmul %13, %14, %cst_6 {dimension_numbers = #tpu.dot_dimension_numbers<[1], [0], [0], [1], [0, 0, 1, 1], [], []>} : vector<8x24xf32>, vector<24x128xf32>, vector<8x128xf32> -> vector<8x128xf32>
    %cst_7 = arith.constant 0.000000e+00 : f32
    %16 = vector.broadcast %cst_7 : f32 to vector<8x128xf32>
    %17 = arith.maximumf %15, %16 : vector<8x128xf32>
    %18 = arith.addf %17, %1 : vector<8x128xf32>
    %c0_8 = arith.constant 0 : index
    %c0_9 = arith.constant 0 : index
    %c0_10 = arith.constant 0 : index
    %19 = vector.load %arg3[%c0_8, %c0_9, %c0_10] : memref<1x8x128xf32, #tpu.memory_space<vmem>>, vector<1x8x128xf32>
    %20 = vector.shape_cast %19 : vector<1x8x128xf32> to vector<8x128xf32>
    %21 = vector.shape_cast %18 : vector<8x128xf32> to vector<1x8x128xf32>
    tpu.vector_store %arg3[%c0_8, %c0_9, %c0_10], %21 {strides = array<i32>} : memref<1x8x128xf32, #tpu.memory_space<vmem>>, vector<1x8x128xf32>,
    return
  }
  func.func @transform_0(%arg0: i32) -> (i32, i32, i32) {
    %c0_i32 = arith.constant 0 : i32
    %c0_i32_0 = arith.constant 0 : i32
    %c0_i32_1 = arith.constant 0 : i32
    return %arg0, %c0_i32, %c0_i32_0 : i32, i32, i32
  }
  func.func @transform_1(%arg0: i32) -> (i32, i32) {
    %c0_i32 = arith.constant 0 : i32
    %c0_i32_0 = arith.constant 0 : i32
    %c0_i32_1 = arith.constant 0 : i32
    return %c0_i32, %c0_i32_0 : i32, i32
  }
  func.func @transform_2(%arg0: i32) -> (i32, i32, i32) {
    %c0_i32 = arith.constant 0 : i32
    %c0_i32_0 = arith.constant 0 : i32
    %c0_i32_1 = arith.constant 0 : i32
    return %arg0, %c0_i32, %c0_i32_0 : i32, i32, i32
  }
}

</mosaic_0001>

<llo_original>
// kernel: tpu_custom_call.1
$region0: #{tpu_custom_call.1}
  #allocation0 [shape = 'u32[]', space=smem, size = 0x4, offset = 0x4, fixed_abs, tag = 'smem constant byte address 0x4 - core index']
  #allocation1 [shape = 'u32[144,128]{1,0:T(1,128)}', space=vmem, size = 0x12000, scoped, tag = 'internal scratch']
  %s0 = inlined_call_operand.hbm [shape: f32[2,8,128], index: 0, kind: input, shape index: {}]
  %s1 = inlined_call_operand.hbm [shape: f32[8,24], index: 1, kind: input, shape index: {}]
  %s2 = inlined_call_operand.hbm [shape: f32[2,8,128], index: 2, kind: output, shape index: {}]
  %s3 = sld [smem:[#allocation0]]
  $region49: #{tpu_custom_call.1} parent=0
    _
  %s5 = ssub.s32 1, %s3
  %s6 = scalar_select 0, %s5, %s3
  $region1: #{tpu_custom_call.1} parent=0
    #allocation2 [shape = 'u8[8192]{0}', space=vmem, size = 0x2000, scoped, tag = 'input window, operand 0']
    #allocation3 [shape = 's32[2]{0}', space=sflag, size = 0x8, scoped, tag = 'scoped memory for tpu_custom_call.1']
    #allocation4 [shape = 's32[2]{0}', space=sflag, size = 0x8, scoped, tag = 'scoped memory for tpu_custom_call.1']
    #allocation5 [shape = 'u8[4096]{0}', space=vmem, size = 0x1000, scoped, tag = 'input window, operand 1, single buffered']
    #allocation6 [shape = 's32[1]{0}', space=sflag, size = 0x4, scoped, tag = 'scoped memory for tpu_custom_call.1']
    #allocation7 [shape = 'u8[8192]{0}', space=vmem, size = 0x2000, scoped, tag = 'output window, operand 0']
    %7 = vsyncpa [#allocation3], 0
    %s8 = scalar_lea.sflag [#allocation3], 1
    %9 = vsyncpa %s8, 0
    %10 = vsyncpa [#allocation6], 0
    %11 = vsyncpa [#allocation4], 0
    %s12 = scalar_lea.sflag [#allocation4], 1
    %13 = vsyncpa %s12, 0
    loop: start=0, step=1, limit=4
    $region2: #{tpu_custom_call.1} parent=1 // loop_pre_header
      _
    $region3: #{tpu_custom_call.1} parent=1 // loop_header
      %s15 = sphi 0, %s19
      %p16 = scmp.ge.s32.totalorder %s15, 4
      %s25 = sphi 0, %s27
      %s28 = sphi 0, %s25
      %s29 = sphi 0, %s28
      %s45 = sphi 0, %s29
      %s49 = sphi 0, %s49
      %s51 = sphi 0, %s49
      %s52 = sphi 0, %s51
      %s66 = sphi 0, %s52
      %s72 = sphi 0, %s74
      %s75 = sphi 0, %s72
      %s76 = sphi 0, %s75
      %s92 = sphi 0, %s76
    $region4: #{tpu_custom_call.1} parent=1 // loop_header_branch
      %18 = sbr.rel (%p16) target = $region8
    $region5: #{tpu_custom_call.1} parent=1 // loop_body
      %s20 = ssub.s32 %s15, 1
      %s21 = ssub.s32 %s15, 2
      %s22 = sadd.s32 %s15, 1
      %s23 = ssub.s32 %s15, %s22
      %p24 = scmp.eq.s32.totalorder %s23, 0
      %s26 = sadd.s32 %s25, 1
      %s27 = scalar_select %p24, %s25, %s26
      %p30 = pneg %p24
      %p31 = scmp.eq.s32.totalorder %s15, 1
      %p32 = por %p30, %p31
      %p33 = scmp.ne.s32.totalorder %s25, %s28
      %p34 = scmp.eq.s32.totalorder %s15, 0
      %p35 = por %p33, %p34
      %p36 = scmp.ne.s32.totalorder %s25, %s28
      %p37 = scmp.eq.s32.totalorder %s20, 1
      %p38 = por %p36, %p37
      %p39 = scmp.ne.s32.totalorder %s28, %s29
      %p40 = scmp.eq.s32.totalorder %s20, 0
      %p41 = por %p39, %p40
      %p42 = scmp.ne.s32.totalorder %s28, %s29
      %p43 = scmp.eq.s32.totalorder %s21, 1
      %p44 = por %p42, %p43
      %p46 = scmp.ne.s32.totalorder %s29, %s45
      %p47 = scmp.eq.s32.totalorder %s21, 0
      %p48 = por %p46, %p47
      %s50 = sadd.s32 %s49, 1
      %p53 = scmp.eq.s32.totalorder %s15, 1
      %p54 = scmp.ne.s32.totalorder %s49, %s51
      %p55 = scmp.eq.s32.totalorder %s15, 0
      %p56 = por %p54, %p55
      %p57 = scmp.ne.s32.totalorder %s49, %s51
      %p58 = scmp.eq.s32.totalorder %s20, 1
      %p59 = por %p57, %p58
      %p60 = scmp.ne.s32.totalorder %s51, %s52
      %p61 = scmp.eq.s32.totalorder %s20, 0
      %p62 = por %p60, %p61
      %p63 = scmp.ne.s32.totalorder %s51, %s52
      %p64 = scmp.eq.s32.totalorder %s21, 1
      %p65 = por %p63, %p64
      %p67 = scmp.ne.s32.totalorder %s52, %s66
      %p68 = scmp.eq.s32.totalorder %s21, 0
      %p69 = por %p67, %p68
      %s70 = ssub.s32 %s15, %s22
      %p71 = scmp.eq.s32.totalorder %s70, 0
      %s73 = sadd.s32 %s72, 1
      %s74 = scalar_select %p71, %s72, %s73
      %p77 = pneg %p71
      %p78 = scmp.eq.s32.totalorder %s15, 1
      %p79 = por %p77, %p78
      %p80 = scmp.ne.s32.totalorder %s72, %s75
      %p81 = scmp.eq.s32.totalorder %s15, 0
      %p82 = por %p80, %p81
      %p83 = scmp.ne.s32.totalorder %s72, %s75
      %p84 = scmp.eq.s32.totalorder %s20, 1
      %p85 = por %p83, %p84
      %p86 = scmp.ne.s32.totalorder %s75, %s76
      %p87 = scmp.eq.s32.totalorder %s20, 0
      %p88 = por %p86, %p87
      %p89 = scmp.ne.s32.totalorder %s75, %s76
      %p90 = scmp.eq.s32.totalorder %s21, 1
      %p91 = por %p89, %p90
      %p93 = scmp.ne.s32.totalorder %s76, %s92
      %p94 = scmp.eq.s32.totalorder %s21, 0
      %p95 = por %p93, %p94
      %p96 = scmp.le.s32.totalorder 1, %s15
      %p97 = scmp.lt.s32.totalorder %s15, 3
      %p98 = pnand %p96, %p97
      %p99 = pneg %p98
      // Predicated region
      $region9: #{tpu_custom_call.1} parent=5 // pred_check
        _
      $region10: #{tpu_custom_call.1} parent=5 // pred_check_branch
        %101 = sbr.rel (%p98) target = $region12
      $region11: #{tpu_custom_call.1} parent=5 // pred_region
        %s102 = ssub.s32 %s15, 1
        // Predicated region
        $region13: #{tpu_custom_call.1} parent=11 // pred_check
          %p103 = pneg %p62
        $region14: #{tpu_custom_call.1} parent=11 // pred_check_branch
          %105 = sbr.rel (%p103) target = $region16
        $region15: #{tpu_custom_call.1} parent=11 // pred_region
          %s107 = ssub.s32 128, 128
          %108 = vsyncadd [#allocation6], %s107
          %s110 = sshll.u32 [#allocation5], 4
          %s111 = int_to_ptr.vmem [resolvable:$true] %s110
          %113 = dma.hbm_to_vmem [thread:$0]  %s1, 128, %s111, [#allocation6]
        $region16: #{tpu_custom_call.1} parent=11 // pred_fallthru
          _
      $region12: #{tpu_custom_call.1} parent=5 // pred_fallthru
        _
      %p114 = scmp.lt.s32.totalorder %s15, 2
      // Predicated region
      $region17: #{tpu_custom_call.1} parent=5 // pred_check
        %p115 = pneg %p114
      $region18: #{tpu_custom_call.1} parent=5 // pred_check_branch
        %117 = sbr.rel (%p115) target = $region20
      $region19: #{tpu_custom_call.1} parent=5 // pred_region
        // Predicated region
        $region21: #{tpu_custom_call.1} parent=19 // pred_check
          %p118 = pneg %p35
        $region22: #{tpu_custom_call.1} parent=19 // pred_check_branch
          %120 = sbr.rel (%p118) target = $region24
        $region23: #{tpu_custom_call.1} parent=19 // pred_region
          %s121 = sand.u32 %s25, 1
          %s122 = scalar_lea.sflag [#allocation3], %s121
          %s123 = sand.u32 %s25, 1
          %s124 = smul.addr %s123, 8
          %s125 = scalar_lea.vmem [#allocation2], %s124
          %s127 = ssub.s32 128, 128
          %128 = vsyncadd %s122, %s127
          %s129 = smul.addr %s15, 128
          %s130 = scalar_lea.hbm %s0, %s129
          %s132 = sshll.u32 %s125, 4
          %s133 = int_to_ptr.vmem [resolvable:$true] %s132
          %135 = dma.hbm_to_vmem [thread:$0]  %s130, 128, %s133, %s122
        $region24: #{tpu_custom_call.1} parent=19 // pred_fallthru
          _
      $region20: #{tpu_custom_call.1} parent=5 // pred_fallthru
        _
      %p136 = scmp.le.s32.totalorder 1, %s15
      %p137 = scmp.lt.s32.totalorder %s15, 3
      %p138 = pnand %p136, %p137
      %p139 = pneg %p138
      // Predicated region
      $region25: #{tpu_custom_call.1} parent=5 // pred_check
        _
      $region26: #{tpu_custom_call.1} parent=5 // pred_check_branch
        %141 = sbr.rel (%p138) target = $region28
      $region27: #{tpu_custom_call.1} parent=5 // pred_region
        %s142 = ssub.s32 %s15, 1
        %s143 = sand.u32 %s28, 1
        %s144 = scalar_lea.sflag [#allocation3], %s143
        %s145 = sand.u32 %s28, 1
        %s146 = smul.addr %s145, 8
        %s147 = scalar_lea.vmem [#allocation2], %s146
        // Predicated region
        $region29: #{tpu_custom_call.1} parent=27 // pred_check
          %p148 = pneg %p41
        $region30: #{tpu_custom_call.1} parent=27 // pred_check_branch
          %150 = sbr.rel (%p148) target = $region32
        $region31: #{tpu_custom_call.1} parent=27 // pred_region
          %151 = dma.done %s144, 128
        $region32: #{tpu_custom_call.1} parent=27 // pred_fallthru
          _
        // Predicated region
        $region33: #{tpu_custom_call.1} parent=27 // pred_check
          %p152 = pneg %p62
        $region34: #{tpu_custom_call.1} parent=27 // pred_check_branch
          %154 = sbr.rel (%p152) target = $region36
        $region35: #{tpu_custom_call.1} parent=27 // pred_region
          %155 = dma.done [#allocation6], 128
        $region36: #{tpu_custom_call.1} parent=27 // pred_fallthru
          _
        %s156 = sand.u32 %s28, 1
        %s157 = scalar_lea.sflag [#allocation3], %s156
        %s158 = sand.u32 %s28, 1
        %s159 = smul.addr %s158, 8
        %s160 = scalar_lea.vmem [#allocation2], %s159
        %p161 = pneg %p41
        %p162 = pneg %p38
        %p163 = pneg %p62
        %p164 = pneg %p59
        %p165 = pneg %p88
        %p166 = pneg %p85
        %s167 = sand.u32 %s75, 1
        %s168 = scalar_lea.sflag [#allocation4], %s167
        %s169 = sand.u32 %s75, 1
        %s170 = smul.addr %s169, 8
        %s171 = scalar_lea.vmem [#allocation7], %s170
        %v172 = vld [vmem:[%s147] sm:$0xff]
        %v173 = vlaneseq
        %v174 = vand.u32 %v173, 127
        %vm175 = vcmp.eq.s32.totalorder %v174, 0
        %176 = vrot.lane.b32.xlu0 %v172, 1
        %v177 = vpop.permute.xlu0 %176
        %v178 = vsel %vm175, 0.0, %v177
        %vm179 = vcmp.eq.s32.totalorder %v174, 127
        %180 = vrot.lane.b32.xlu0 %v172, 127
        %v181 = vpop.permute.xlu0 %180
        %v182 = vsel %vm179, 0.0, %v181
        %v183 = vld [vmem:[#allocation5] sm:$0xff]
        %vm184 = vcmask 195584
        %v186 = vsel %vm184, %v183, 0
        %188 = vmatprep.subr.mxu0 0.0
        %189 = vmatpush1.msra.mxu0 0.0
        %190 = vmatprep.subr.mxu0 0.0
        %191 = vmatpush1.msra.mxu0 0.0
        %192 = vmatprep.subr.mxu0 0.0
        %193 = vmatpush1.msra.mxu0 0.0
        %194 = vmatprep.subr.mxu0 0.0
        %195 = vmatpush1.msra.mxu0 0.0
        %196 = vmatprep.subr.mxu0 0.0
        %197 = vmatpush1.msra.mxu0 0.0
        %198 = vmatprep.subr.mxu0 0.0
        %199 = vmatpush1.msra.mxu0 0.0
        %200 = vmatprep.subr.mxu0 0.0
        %201 = vmatpush1.msra.mxu0 0.0
        %202 = vmatprep.subr.mxu0 0.0
        %203 = vmatpush1.msra.mxu0 0.0
        %204 = vmatprep.subr.mxu0 0.0
        %205 = vmatpush1.msra.mxu0 0.0
        %206 = vmatprep.subr.mxu0 0.0
        %207 = vmatpush1.msra.mxu0 0.0
        %208 = vmatprep.subr.mxu0 0.0
        %209 = vmatpush1.msra.mxu0 0.0
        %210 = vmatprep.subr.mxu0 0.0
        %211 = vmatpush1.msra.mxu0 0.0
        %212 = vmatprep.subr.mxu0 0.0
        %213 = vmatpush1.msra.mxu0 0.0
        %214 = vmatprep.subr.mxu0 0.0
        %215 = vmatpush1.msra.mxu0 %v182
        %216 = vmatprep.subr.mxu0 0.0
        %217 = vmatpush1.msra.mxu0 %v172
        %218 = vmatprep.subr.mxu0 0.0
        %219 = vmatpush1.msra.mxu0 %v178
        %220 = vmatprep.subr.mxu0 0.0
        %221 = vmatpush2.msra.mxu0 0.0
        %222 = vmatprep.subr.mxu0 0.0
        %223 = vmatpush2.msra.mxu0 0.0
        %224 = vmatprep.subr.mxu0 0.0
        %225 = vmatpush2.msra.mxu0 0.0
        %226 = vmatprep.subr.mxu0 0.0
        %227 = vmatpush2.msra.mxu0 0.0
        %228 = vmatprep.subr.mxu0 0.0
        %229 = vmatpush2.msra.mxu0 0.0
        %230 = vmatprep.subr.mxu0 0.0
        %231 = vmatpush2.msra.mxu0 0.0
        %232 = vmatprep.subr.mxu0 0.0
        %233 = vmatpush2.msra.mxu0 0.0
        %234 = vmatprep.subr.mxu0 0.0
        %235 = vmatpush2.msra.mxu0 0.0
        %236 = vmatprep.subr.mxu0 0.0
        %237 = vmatpush2.msra.mxu0 0.0
        %238 = vmatprep.subr.mxu0 0.0
        %239 = vmatpush2.msra.mxu0 0.0
        %240 = vmatprep.subr.mxu0 0.0
        %241 = vmatpush2.msra.mxu0 0.0
        %242 = vmatprep.subr.mxu0 0.0
        %243 = vmatpush2.msra.mxu0 0.0
        %244 = vmatprep.subr.mxu0 0.0
        %245 = vmatpush2.msra.mxu0 0.0
        %246 = vmatprep.subr.mxu0 0.0
        %247 = vmatpush2.msra.mxu0 0.0
        %248 = vmatprep.subr.mxu0 0.0
        %249 = vmatpush2.msra.mxu0 0.0
        %250 = vmatprep.subr.mxu0 0.0
        %251 = vmatpush2.msra.mxu0 0.0
        %252 = vmatprep.mubr.f32.mxu0 0.0
        %253 = vmatmul.mubr.f32.gmra.mxu0 %v186
        %v254 = vpop.f32.mrf.mxu0
        %v255 = vadd.f32 0.0, %v254
        %v256 = vpop.f32.mrf.mxu0
        %257 = vdwg.mxu0
        %v258 = vmax.f32 %v255, 0.0
        %v259 = vadd.f32 %v258, %v172
        %260 = vst [vmem:[%s171] sm:$0xff] %v259
        %s261 = sand.u32 %s75, 1
        %s262 = scalar_lea.sflag [#allocation4], %s261
        %s263 = sand.u32 %s75, 1
        %s264 = smul.addr %s263, 8
        %s265 = scalar_lea.vmem [#allocation7], %s264
        // Predicated region
        $region37: #{tpu_custom_call.1} parent=27 // pred_check
          %p266 = pneg %p85
        $region38: #{tpu_custom_call.1} parent=27 // pred_check_branch
          %268 = sbr.rel (%p266) target = $region40
        $region39: #{tpu_custom_call.1} parent=27 // pred_region
          %s270 = ssub.s32 128, 128
          %271 = vsyncadd %s262, %s270
          %s272 = smul.addr %s20, 128
          %s273 = scalar_lea.hbm %s2, %s272
          %s275 = sshll.u32 %s265, 4
          %s276 = int_to_ptr.vmem [resolvable:$true] %s275
          %278 = dma.vmem_to_hbm [thread:$0]  %s276, 128, %s273, %s262
        $region40: #{tpu_custom_call.1} parent=27 // pred_fallthru
          _
      $region28: #{tpu_custom_call.1} parent=5 // pred_fallthru
        _
      %p279 = scmp.le.s32.totalorder 2, %s15
      // Predicated region
      $region41: #{tpu_custom_call.1} parent=5 // pred_check
        %p280 = pneg %p279
      $region42: #{tpu_custom_call.1} parent=5 // pred_check_branch
        %282 = sbr.rel (%p280) target = $region44
      $region43: #{tpu_custom_call.1} parent=5 // pred_region
        %s283 = ssub.s32 %s15, 2
        // Predicated region
        $region45: #{tpu_custom_call.1} parent=43 // pred_check
          %p284 = pneg %p91
        $region46: #{tpu_custom_call.1} parent=43 // pred_check_branch
          %286 = sbr.rel (%p284) target = $region48
        $region47: #{tpu_custom_call.1} parent=43 // pred_region
          %s287 = sand.u32 %s76, 1
          %s288 = scalar_lea.sflag [#allocation4], %s287
          %s289 = sand.u32 %s76, 1
          %s290 = smul.addr %s289, 8
          %s291 = scalar_lea.vmem [#allocation7], %s290
          %292 = dma.done %s288, 128
        $region48: #{tpu_custom_call.1} parent=43 // pred_fallthru
          _
      $region44: #{tpu_custom_call.1} parent=5 // pred_fallthru
        _
    $region6: #{tpu_custom_call.1} parent=1 // loop_footer
      %s19 = sadd.s32 1, %s15
    $region7: #{tpu_custom_call.1} parent=1 // loop_footer_branch
      %14 = sbr.rel target = $region3
    $region8: #{tpu_custom_call.1} parent=1 // loop_exit
      _
    %293 = vsyncpa [#allocation3], 1
    %s294 = scalar_lea.sflag [#allocation3], 1
    %295 = vsyncpa %s294, 1
    %296 = vsyncpa [#allocation6], 1
    %297 = vsyncpa [#allocation4], 1
    %s298 = scalar_lea.sflag [#allocation4], 1
    %299 = vsyncpa %s298, 1

</llo_original>
